<compile_context>
chip_gen: v6e
topology: v6e:2x2x1
jax: 0.10.0
libtpu: 0.0.40
codegen_flags: <defaults>
</compile_context>

<pallas_src>
import functools

import jax
import jax.numpy as jnp
from jax.experimental import pallas as pl
from jax.experimental.pallas import tpu as pltpu


def _round_up(x, m):
    return ((x + m - 1) // m) * m


def _tp_weights_kernel(edge_ref, node_ref, w_ref, out_ref, *, A, K):
    # edge_ref: (tb, E), node_ref: (tb, A)
    # w_ref:    (E, A*K) with w_ref[e, a*K + k] == weights[a, e, k]
    # out_ref:  (tb, K)

    # Single lane-dense MXU pass: P[b, a*K + k] = sum_e edge[b, e] * W[a, e, k]
    p = jnp.dot(edge_ref[...], w_ref[...], preferred_element_type=jnp.float32)

    # Reduce over the (small) element axis A with unrolled f32 VPU FMAs.
    # At MACE scales (A of a few .. a few tens) this stays hidden under the
    # DMA; for very large A route the broadcast through an MXU selector matmul.
    node = node_ref[...].astype(jnp.float32)
    acc = node[:, 0:1] * p[:, :K]
    for a in range(1, A):
        acc = acc + node[:, a:a + 1] * p[:, a * K:(a + 1) * K]

    out_ref[...] = acc.astype(out_ref.dtype)


@functools.partial(jax.jit, static_argnames=("tile_b",))
def tensor_product_weights_block(node_attrs, edge_feats, weights, *, tile_b=8192):
    """Pallas TPU implementation of einsum('be, ba, aek -> bk', edge, node, W).

    tile_b = max batch rows per grid step.  Default 8192 works on all
    generations; 16384 is viable on v6e (128 MiB VMEM), keep <= 8192 on v7x.
    """
    B, E = edge_feats.shape
    B_n, A = node_attrs.shape
    A_w, E_w, K = weights.shape
    assert A_w == A and E_w == E and B_n == B

    out_dtype = jnp.result_type(edge_feats.dtype, node_attrs.dtype, weights.dtype)

    # --- batch tiling: balanced tiles, ragged tail handled by Pallas masking,
    #     >= 2 grid steps when B allows (megacore sharding on v7x). -----------
    tile_cap = max(8, _round_up(int(tile_b), 8))
    min_steps = 2 if B > 8 else 1
    n_steps = max(pl.cdiv(B, tile_cap), min_steps)
    tb = max(8, _round_up(pl.cdiv(B, n_steps), 8))
    grid = (pl.cdiv(B, tb),)

    # Pre-transpose weights once (tiny): W2[e, a*K + k] = weights[a, e, k].
    w2 = jnp.transpose(weights, (1, 0, 2)).reshape(E, A * K)

    # --- VMEM budget: lane/sublane padded, double-buffered tiles + margin. ---
    def tile_bytes(rows, cols, itemsize):
        return _round_up(rows, 8) * _round_up(cols, 128) * itemsize

    budget = 2 * (
        tile_bytes(tb, E, jnp.dtype(edge_feats.dtype).itemsize)
        + tile_bytes(tb, A, jnp.dtype(node_attrs.dtype).itemsize)
        + tile_bytes(tb, K, jnp.dtype(out_dtype).itemsize)
        + tile_bytes(E, A * K, jnp.dtype(w2.dtype).itemsize)
    ) + (4 << 20)
    vmem_limit = int(min(max(budget, 16 << 20), 48 << 20))

    itemsize = jnp.dtype(out_dtype).itemsize
    cost = pl.CostEstimate(
        flops=2 * B * A * K * (E + 1),
        transcendentals=0,
        bytes_accessed=(B * (E + A + K) + E * A * K) * itemsize,
    )

    kernel = functools.partial(_tp_weights_kernel, A=A, K=K)
    return pl.pallas_call(
        kernel,
        out_shape=jax.ShapeDtypeStruct((B, K), out_dtype),
        grid_spec=pltpu.PrefetchScalarGridSpec(
            num_scalar_prefetch=0,
            grid=grid,
            in_specs=[
                pl.BlockSpec((tb, E), lambda i: (i, 0)),
                pl.BlockSpec((tb, A), lambda i: (i, 0)),
                pl.BlockSpec((E, A * K), lambda i: (0, 0)),
            ],
            out_specs=pl.BlockSpec((tb, K), lambda i: (i, 0)),
        ),
        compiler_params=pltpu.CompilerParams(
            dimension_semantics=("parallel",),
            vmem_limit_bytes=vmem_limit,
        ),
        cost_estimate=cost,
    )(edge_feats, node_attrs, w2)


def xavier_uniform_3d(key, num_elements, num_edge_feats, num_feats_out,
                      dtype=jnp.float32):
    # Matches torch.nn.init.xavier_uniform_ fan computation for a 3-D tensor:
    #   fan_in  = shape[1] * prod(shape[2:]) = num_edge_feats * num_feats_out
    #   fan_out = shape[0] * prod(shape[2:]) = num_elements  * num_feats_out
    fan_in = num_edge_feats * num_feats_out
    fan_out = num_elements * num_feats_out
    bound = (6.0 / (fan_in + fan_out)) ** 0.5
    return jax.random.uniform(
        key,
        (num_elements, num_edge_feats, num_feats_out),
        dtype=dtype,
        minval=-bound,
        maxval=bound,
    )


if __name__ == "__main__":
    # Small shapes consistent with the module's forward:
    #   edge_feats: (B, num_edge_feats), node_attrs: (B, num_elements)
    B = 20              # number of edges (ragged -> exercises masked tail block)
    num_elements = 4    # A
    num_edge_feats = 8  # E
    num_feats_out = 32  # K

    key = jax.random.PRNGKey(0)
    k_w, k_e, k_n = jax.random.split(key, 3)

    weights = xavier_uniform_3d(k_w, num_elements, num_edge_feats, num_feats_out)
    edge_feats = jax.random.normal(k_e, (B, num_edge_feats), dtype=jnp.float32)
    node_attrs = jax.random.normal(k_n, (B, num_elements), dtype=jnp.float32)

    out = tensor_product_weights_block(node_attrs, edge_feats, weights)
    out = jax.block_until_ready(out)

    # Reference check against plain-JAX einsum (same semantics as the torch module).
    ref = jnp.einsum("be,ba,aek->bk", edge_feats, node_attrs, weights)
    assert out.shape == (B, num_feats_out)
    assert jnp.allclose(out, ref, atol=1e-5, rtol=1e-5)

    print("KERNEL_OK")
</pallas_src>

<mosaic_0001>
module attributes {stable_mosaic.version = 11 : i64} {
  func.func @_tp_weights_kernel(%arg0: i32, %arg1: memref<16x8xf32, #tpu.memory_space<vmem>>, %arg2: memref<16x4xf32, #tpu.memory_space<vmem>>, %arg3: memref<8x128xf32, #tpu.memory_space<vmem>>, %arg4: memref<16x32xf32, #tpu.memory_space<vmem>>) attributes {dimension_semantics = [#tpu.dimension_semantics<parallel>], iteration_bounds = array<i64: 2>, scalar_prefetch = 0 : i64, scratch_operands = 0 : i64, tpu.core_type = #tpu.core_type<tc>, window_params = [{transform_indices = @transform_0, window_bounds = array<i64: 16, 8>}, {transform_indices = @transform_1, window_bounds = array<i64: 16, 4>}, {pipeline_mode = #tpu.pipeline_mode<synchronous>, transform_indices = @transform_2, window_bounds = array<i64: 8, 128>}, {transform_indices = @transform_3, window_bounds = array<i64: 16, 32>}]} {
    %c0 = arith.constant 0 : index
    %c0_0 = arith.constant 0 : index
    %0 = vector.load %arg1[%c0, %c0_0] : memref<16x8xf32, #tpu.memory_space<vmem>>, vector<16x8xf32>
    %c0_1 = arith.constant 0 : index
    %c0_2 = arith.constant 0 : index
    %1 = vector.load %arg3[%c0_1, %c0_2] : memref<8x128xf32, #tpu.memory_space<vmem>>, vector<8x128xf32>
    %cst = arith.constant dense<0.000000e+00> : vector<16x128xf32>
    %2 = tpu.matmul %0, %1, %cst {dimension_numbers = #tpu.dot_dimension_numbers<[1], [0], [0], [1], [0, 0, 1, 1], [], []>} : vector<16x8xf32>, vector<8x128xf32>, vector<16x128xf32> -> vector<16x128xf32>
    %c0_3 = arith.constant 0 : index
    %c0_4 = arith.constant 0 : index
    %3 = vector.load %arg2[%c0_3, %c0_4] : memref<16x4xf32, #tpu.memory_space<vmem>>, vector<16x4xf32>
    %4 = vector.extract_strided_slice %3 {offsets = [0, 0], sizes = [16, 1], strides = [1, 1]} : vector<16x4xf32> to vector<16x1xf32>
    %5 = vector.extract_strided_slice %2 {offsets = [0, 0], sizes = [16, 32], strides = [1, 1]} : vector<16x128xf32> to vector<16x32xf32>
    %6 = vector.broadcast %4 : vector<16x1xf32> to vector<16x32xf32>
    %7 = arith.mulf %6, %5 : vector<16x32xf32>
    %8 = vector.extract_strided_slice %3 {offsets = [0, 1], sizes = [16, 1], strides = [1, 1]} : vector<16x4xf32> to vector<16x1xf32>
    %9 = vector.extract_strided_slice %2 {offsets = [0, 32], sizes = [16, 32], strides = [1, 1]} : vector<16x128xf32> to vector<16x32xf32>
    %10 = vector.broadcast %8 : vector<16x1xf32> to vector<16x32xf32>
    %11 = arith.mulf %10, %9 : vector<16x32xf32>
    %12 = arith.addf %7, %11 : vector<16x32xf32>
    %13 = vector.extract_strided_slice %3 {offsets = [0, 2], sizes = [16, 1], strides = [1, 1]} : vector<16x4xf32> to vector<16x1xf32>
    %14 = vector.extract_strided_slice %2 {offsets = [0, 64], sizes = [16, 32], strides = [1, 1]} : vector<16x128xf32> to vector<16x32xf32>
    %15 = vector.broadcast %13 : vector<16x1xf32> to vector<16x32xf32>
    %16 = arith.mulf %15, %14 : vector<16x32xf32>
    %17 = arith.addf %12, %16 : vector<16x32xf32>
    %18 = vector.extract_strided_slice %3 {offsets = [0, 3], sizes = [16, 1], strides = [1, 1]} : vector<16x4xf32> to vector<16x1xf32>
    %19 = vector.extract_strided_slice %2 {offsets = [0, 96], sizes = [16, 32], strides = [1, 1]} : vector<16x128xf32> to vector<16x32xf32>
    %20 = vector.broadcast %18 : vector<16x1xf32> to vector<16x32xf32>
    %21 = arith.mulf %20, %19 : vector<16x32xf32>
    %22 = arith.addf %17, %21 : vector<16x32xf32>
    %c0_5 = arith.constant 0 : index
    %c0_6 = arith.constant 0 : index
    %23 = vector.load %arg4[%c0_5, %c0_6] : memref<16x32xf32, #tpu.memory_space<vmem>>, vector<16x32xf32>
    tpu.vector_store %arg4[%c0_5, %c0_6], %22 {strides = array<i32>} : memref<16x32xf32, #tpu.memory_space<vmem>>, vector<16x32xf32>,
    return
  }
  func.func @transform_0(%arg0: i32) -> (i32, i32) {
    %c0_i32 = arith.constant 0 : i32
    %c0_i32_0 = arith.constant 0 : i32
    return %arg0, %c0_i32 : i32, i32
  }
  func.func @transform_1(%arg0: i32) -> (i32, i32) {
    %c0_i32 = arith.constant 0 : i32
    %c0_i32_0 = arith.constant 0 : i32
    return %arg0, %c0_i32 : i32, i32
  }
  func.func @transform_2(%arg0: i32) -> (i32, i32) {
    %c0_i32 = arith.constant 0 : i32
    %c0_i32_0 = arith.constant 0 : i32
    %c0_i32_1 = arith.constant 0 : i32
    return %c0_i32, %c0_i32_0 : i32, i32
  }
  func.func @transform_3(%arg0: i32) -> (i32, i32) {
    %c0_i32 = arith.constant 0 : i32
    %c0_i32_0 = arith.constant 0 : i32
    return %arg0, %c0_i32 : i32, i32
  }
}

</mosaic_0001>

<llo_original>
// kernel: tensor_product_weights_block.1
$region0: #{tensor_product_weights_block.1}
  #allocation0 [shape = 'u32[]', space=smem, size = 0x4, offset = 0x4, fixed_abs, tag = 'smem constant byte address 0x4 - core index']
  #allocation1 [shape = 'u32[144,128]{1,0:T(1,128)}', space=vmem, size = 0x12000, scoped, tag = 'internal scratch']
  %s0 = inlined_call_operand.vmem [shape: f32[20,8], index: 0, kind: input, shape index: {}]
  %s1 = inlined_call_operand.vmem [shape: f32[20,4], index: 1, kind: input, shape index: {}]
  %s2 = inlined_call_operand.vmem [shape: f32[8,128], index: 2, kind: input, shape index: {}]
  %s3 = inlined_call_operand.hbm [shape: f32[20,32], index: 3, kind: output, shape index: {}]
  %s4 = sld [smem:[#allocation0]]
  $region45: #{tensor_product_weights_block.1} parent=0
    _
  %s6 = ssub.s32 1, %s4
  %s7 = scalar_select 0, %s6, %s4
  $region1: #{tensor_product_weights_block.1} parent=0
    #allocation2 [shape = 'u8[16384]{0}', space=vmem, size = 0x4000, scoped, tag = 'output window, operand 0']
    #allocation3 [shape = 's32[2]{0}', space=sflag, size = 0x8, scoped, tag = 'scoped memory for tensor_product_weights_block.1']
    %8 = vsyncpa [#allocation3], 0
    %s9 = scalar_lea.sflag [#allocation3], 1
    %10 = vsyncpa %s9, 0
    loop: start=0, step=1, limit=4
    $region2: #{tensor_product_weights_block.1} parent=1 // loop_pre_header
      _
    $region3: #{tensor_product_weights_block.1} parent=1 // loop_header
      %s12 = sphi 0, %s16
      %p13 = scmp.ge.s32.totalorder %s12, 4
      %s22 = sphi 0, %s24
      %s25 = sphi 0, %s22
      %s26 = sphi 0, %s25
      %s42 = sphi 0, %s26
      %s48 = sphi 0, %s50
      %s51 = sphi 0, %s48
      %s52 = sphi 0, %s51
      %s68 = sphi 0, %s52
      %s72 = sphi 0, %s72
      %s74 = sphi 0, %s72
      %s75 = sphi 0, %s74
      %s89 = sphi 0, %s75
      %s95 = sphi 0, %s97
      %s98 = sphi 0, %s95
      %s99 = sphi 0, %s98
      %s115 = sphi 0, %s99
    $region4: #{tensor_product_weights_block.1} parent=1 // loop_header_branch
      %15 = sbr.rel (%p13) target = $region8
    $region5: #{tensor_product_weights_block.1} parent=1 // loop_body
      %s17 = ssub.s32 %s12, 1
      %s18 = ssub.s32 %s12, 2
      %s19 = sadd.s32 %s12, 1
      %s20 = ssub.s32 %s12, %s19
      %p21 = scmp.eq.s32.totalorder %s20, 0
      %s23 = sadd.s32 %s22, 1
      %s24 = scalar_select %p21, %s22, %s23
      %p27 = pneg %p21
      %p28 = scmp.eq.s32.totalorder %s12, 1
      %p29 = por %p27, %p28
      %p30 = scmp.ne.s32.totalorder %s22, %s25
      %p31 = scmp.eq.s32.totalorder %s12, 0
      %p32 = por %p30, %p31
      %p33 = scmp.ne.s32.totalorder %s22, %s25
      %p34 = scmp.eq.s32.totalorder %s17, 1
      %p35 = por %p33, %p34
      %p36 = scmp.ne.s32.totalorder %s25, %s26
      %p37 = scmp.eq.s32.totalorder %s17, 0
      %p38 = por %p36, %p37
      %p39 = scmp.ne.s32.totalorder %s25, %s26
      %p40 = scmp.eq.s32.totalorder %s18, 1
      %p41 = por %p39, %p40
      %p43 = scmp.ne.s32.totalorder %s26, %s42
      %p44 = scmp.eq.s32.totalorder %s18, 0
      %p45 = por %p43, %p44
      %s46 = ssub.s32 %s12, %s19
      %p47 = scmp.eq.s32.totalorder %s46, 0
      %s49 = sadd.s32 %s48, 1
      %s50 = scalar_select %p47, %s48, %s49
      %p53 = pneg %p47
      %p54 = scmp.eq.s32.totalorder %s12, 1
      %p55 = por %p53, %p54
      %p56 = scmp.ne.s32.totalorder %s48, %s51
      %p57 = scmp.eq.s32.totalorder %s12, 0
      %p58 = por %p56, %p57
      %p59 = scmp.ne.s32.totalorder %s48, %s51
      %p60 = scmp.eq.s32.totalorder %s17, 1
      %p61 = por %p59, %p60
      %p62 = scmp.ne.s32.totalorder %s51, %s52
      %p63 = scmp.eq.s32.totalorder %s17, 0
      %p64 = por %p62, %p63
      %p65 = scmp.ne.s32.totalorder %s51, %s52
      %p66 = scmp.eq.s32.totalorder %s18, 1
      %p67 = por %p65, %p66
      %p69 = scmp.ne.s32.totalorder %s52, %s68
      %p70 = scmp.eq.s32.totalorder %s18, 0
      %p71 = por %p69, %p70
      %s73 = sadd.s32 %s72, 1
      %p76 = scmp.eq.s32.totalorder %s12, 1
      %p77 = scmp.ne.s32.totalorder %s72, %s74
      %p78 = scmp.eq.s32.totalorder %s12, 0
      %p79 = por %p77, %p78
      %p80 = scmp.ne.s32.totalorder %s72, %s74
      %p81 = scmp.eq.s32.totalorder %s17, 1
      %p82 = por %p80, %p81
      %p83 = scmp.ne.s32.totalorder %s74, %s75
      %p84 = scmp.eq.s32.totalorder %s17, 0
      %p85 = por %p83, %p84
      %p86 = scmp.ne.s32.totalorder %s74, %s75
      %p87 = scmp.eq.s32.totalorder %s18, 1
      %p88 = por %p86, %p87
      %p90 = scmp.ne.s32.totalorder %s75, %s89
      %p91 = scmp.eq.s32.totalorder %s18, 0
      %p92 = por %p90, %p91
      %s93 = ssub.s32 %s12, %s19
      %p94 = scmp.eq.s32.totalorder %s93, 0
      %s96 = sadd.s32 %s95, 1
      %s97 = scalar_select %p94, %s95, %s96
      %p100 = pneg %p94
      %p101 = scmp.eq.s32.totalorder %s12, 1
      %p102 = por %p100, %p101
      %p103 = scmp.ne.s32.totalorder %s95, %s98
      %p104 = scmp.eq.s32.totalorder %s12, 0
      %p105 = por %p103, %p104
      %p106 = scmp.ne.s32.totalorder %s95, %s98
      %p107 = scmp.eq.s32.totalorder %s17, 1
      %p108 = por %p106, %p107
      %p109 = scmp.ne.s32.totalorder %s98, %s99
      %p110 = scmp.eq.s32.totalorder %s17, 0
      %p111 = por %p109, %p110
      %p112 = scmp.ne.s32.totalorder %s98, %s99
      %p113 = scmp.eq.s32.totalorder %s18, 1
      %p114 = por %p112, %p113
      %p116 = scmp.ne.s32.totalorder %s99, %s115
      %p117 = scmp.eq.s32.totalorder %s18, 0
      %p118 = por %p116, %p117
      %p119 = scmp.le.s32.totalorder 1, %s12
      %p120 = scmp.lt.s32.totalorder %s12, 3
      %p121 = pnand %p119, %p120
      %p122 = pneg %p121
      // Predicated region
      $region9: #{tensor_product_weights_block.1} parent=5 // pred_check
        _
      $region10: #{tensor_product_weights_block.1} parent=5 // pred_check_branch
        %124 = sbr.rel (%p121) target = $region12
      $region11: #{tensor_product_weights_block.1} parent=5 // pred_region
        %s125 = ssub.s32 %s12, 1
        // Predicated region
        $region13: #{tensor_product_weights_block.1} parent=11 // pred_check
          %p126 = pneg %p85
        $region14: #{tensor_product_weights_block.1} parent=11 // pred_check_branch
          %128 = sbr.rel (%p126) target = $region16
        $region15: #{tensor_product_weights_block.1} parent=11 // pred_region
          _
        $region16: #{tensor_product_weights_block.1} parent=11 // pred_fallthru
          _
      $region12: #{tensor_product_weights_block.1} parent=5 // pred_fallthru
        _
      %p129 = scmp.lt.s32.totalorder %s12, 2
      // Predicated region
      $region17: #{tensor_product_weights_block.1} parent=5 // pred_check
        %p130 = pneg %p129
      $region18: #{tensor_product_weights_block.1} parent=5 // pred_check_branch
        %132 = sbr.rel (%p130) target = $region20
      $region19: #{tensor_product_weights_block.1} parent=5 // pred_region
        // Predicated region
        $region21: #{tensor_product_weights_block.1} parent=19 // pred_check
          %p133 = pneg %p32
        $region22: #{tensor_product_weights_block.1} parent=19 // pred_check_branch
          %135 = sbr.rel (%p133) target = $region24
        $region23: #{tensor_product_weights_block.1} parent=19 // pred_region
          %s136 = smul.u32 2, %s12
          %s137 = ssub.s32 3, %s136
          %p138 = scmp.lt.s32.totalorder %s137, 2
          %s139 = scalar_select %p138, %s137, 2
          %s140 = smul.u32 128, %s139
          %p141 = scmp.lt.s32.totalorder %s136, 2
          %s142 = scalar_select %p141, %s136, 2
          %s143 = smul.addr %s142, 8
          %s144 = scalar_lea.vmem %s0, %s143
          %s145 = smul.u32 2, %s12
          %s146 = ssub.s32 3, %s145
          %p147 = scmp.lt.s32.totalorder %s146, 2
          %s148 = scalar_select %p147, %s146, 2
          %s149 = smul.u32 128, %s148
        $region24: #{tensor_product_weights_block.1} parent=19 // pred_fallthru
          _
        // Predicated region
        $region25: #{tensor_product_weights_block.1} parent=19 // pred_check
          %p150 = pneg %p58
        $region26: #{tensor_product_weights_block.1} parent=19 // pred_check_branch
          %152 = sbr.rel (%p150) target = $region28
        $region27: #{tensor_product_weights_block.1} parent=19 // pred_region
          %s153 = smul.u32 2, %s12
          %s154 = ssub.s32 3, %s153
          %p155 = scmp.lt.s32.totalorder %s154, 2
          %s156 = scalar_select %p155, %s154, 2
          %s157 = smul.u32 128, %s156
          %p158 = scmp.lt.s32.totalorder %s153, 2
          %s159 = scalar_select %p158, %s153, 2
          %s160 = smul.addr %s159, 8
          %s161 = scalar_lea.vmem %s1, %s160
          %s162 = smul.u32 2, %s12
          %s163 = ssub.s32 3, %s162
          %p164 = scmp.lt.s32.totalorder %s163, 2
          %s165 = scalar_select %p164, %s163, 2
          %s166 = smul.u32 128, %s165
        $region28: #{tensor_product_weights_block.1} parent=19 // pred_fallthru
          _
      $region20: #{tensor_product_weights_block.1} parent=5 // pred_fallthru
        _
      %p167 = scmp.le.s32.totalorder 1, %s12
      %p168 = scmp.lt.s32.totalorder %s12, 3
      %p169 = pnand %p167, %p168
      %p170 = pneg %p169
      // Predicated region
      $region29: #{tensor_product_weights_block.1} parent=5 // pred_check
        _
      $region30: #{tensor_product_weights_block.1} parent=5 // pred_check_branch
        %172 = sbr.rel (%p169) target = $region32
      $region31: #{tensor_product_weights_block.1} parent=5 // pred_region
        %s173 = ssub.s32 %s12, 1
        %s174 = smul.u32 2, %s17
        %s175 = ssub.s32 3, %s174
        %p176 = scmp.lt.s32.totalorder %s175, 2
        %s177 = scalar_select %p176, %s175, 2
        %s178 = smul.u32 128, %s177
        %p179 = scmp.lt.s32.totalorder %s174, 2
        %s180 = scalar_select %p179, %s174, 2
        %s181 = smul.addr %s180, 8
        %s182 = scalar_lea.vmem %s0, %s181
        %p183 = pneg %p38
        %p184 = pneg %p35
        %s185 = smul.u32 2, %s17
        %s186 = ssub.s32 3, %s185
        %p187 = scmp.lt.s32.totalorder %s186, 2
        %s188 = scalar_select %p187, %s186, 2
        %s189 = smul.u32 128, %s188
        %p190 = scmp.lt.s32.totalorder %s185, 2
        %s191 = scalar_select %p190, %s185, 2
        %s192 = smul.addr %s191, 8
        %s193 = scalar_lea.vmem %s1, %s192
        %p194 = pneg %p64
        %p195 = pneg %p61
        %p196 = pneg %p85
        %p197 = pneg %p82
        %p198 = pneg %p111
        %p199 = pneg %p108
        %s200 = sand.u32 %s98, 1
        %s201 = scalar_lea.sflag [#allocation3], %s200
        %s202 = sand.u32 %s98, 1
        %s203 = smul.addr %s202, 16
        %s204 = scalar_lea.vmem [#allocation2], %s203
        %s205 = smul.u32 2, %s17
        %s206 = ssub.s32 3, %s205
        %p207 = scmp.lt.s32.totalorder %s206, 2
        %s208 = scalar_select %p207, %s206, 2
        %s209 = smul.u32 128, %s208
        %p210 = scmp.lt.s32.totalorder %s205, 2
        %s211 = scalar_select %p210, %s205, 2
        %s212 = smul.addr %s211, 8
        %s213 = scalar_lea.vmem %s0, %s212
        %s214 = smul.u32 2, %s17
        %s215 = ssub.s32 3, %s214
        %p216 = scmp.lt.s32.totalorder %s215, 2
        %s217 = scalar_select %p216, %s215, 2
        %s218 = smul.u32 128, %s217
        %s219 = smul.u32 2, %s17
        %s220 = ssub.s32 3, %s219
        %p221 = scmp.lt.s32.totalorder %s220, 2
        %s222 = scalar_select %p221, %s220, 2
        %s223 = smul.u32 128, %s222
        %p224 = scmp.lt.s32.totalorder %s219, 2
        %s225 = scalar_select %p224, %s219, 2
        %s226 = smul.addr %s225, 8
        %s227 = scalar_lea.vmem %s1, %s226
        %s228 = smul.u32 2, %s17
        %s229 = ssub.s32 3, %s228
        %p230 = scmp.lt.s32.totalorder %s229, 2
        %s231 = scalar_select %p230, %s229, 2
        %s232 = smul.u32 128, %s231
        %s233 = smul.u32 2, %s17
        %s234 = ssub.s32 3, %s233
        %p235 = scmp.lt.s32.totalorder %s234, 2
        %s236 = scalar_select %p235, %s234, 2
        %s237 = smul.u32 128, %s236
        %v238 = vld [vmem:[%s213] sm:$0xff]
        %v239 = vld [vmem:[%s213 + $0x8] sm:$0xff]
        %v240 = vld [vmem:[%s2] sm:$0xff]
        %vm241 = vcmask 64512
        %v243 = vsel %vm241, %v238, 0
        %v246 = vsel %vm241, %v239, 0
        %248 = vmatprep.subr.mxu0 0.0
        %249 = vmatpush1.msra.mxu0 0.0
        %250 = vmatprep.subr.mxu0 0.0
        %251 = vmatpush1.msra.mxu0 0.0
        %252 = vmatprep.subr.mxu0 0.0
        %253 = vmatpush1.msra.mxu0 0.0
        %254 = vmatprep.subr.mxu0 0.0
        %255 = vmatpush1.msra.mxu0 0.0
        %256 = vmatprep.subr.mxu0 0.0
        %257 = vmatpush1.msra.mxu0 0.0
        %258 = vmatprep.subr.mxu0 0.0
        %259 = vmatpush1.msra.mxu0 0.0
        %260 = vmatprep.subr.mxu0 0.0
        %261 = vmatpush1.msra.mxu0 0.0
        %262 = vmatprep.subr.mxu0 0.0
        %263 = vmatpush1.msra.mxu0 0.0
        %264 = vmatprep.subr.mxu0 0.0
        %265 = vmatpush1.msra.mxu0 0.0
        %266 = vmatprep.subr.mxu0 0.0
        %267 = vmatpush1.msra.mxu0 0.0
        %268 = vmatprep.subr.mxu0 0.0
        %269 = vmatpush1.msra.mxu0 0.0
        %270 = vmatprep.subr.mxu0 0.0
        %271 = vmatpush1.msra.mxu0 0.0
        %272 = vmatprep.subr.mxu0 0.0
        %273 = vmatpush1.msra.mxu0 0.0
        %274 = vmatprep.subr.mxu0 0.0
        %275 = vmatpush1.msra.mxu0 0.0
        %276 = vmatprep.subr.mxu0 0.0
        %277 = vmatpush1.msra.mxu0 0.0
        %278 = vmatprep.subr.mxu0 0.0
        %279 = vmatpush1.msra.mxu0 %v240
        %280 = vmatprep.subr.mxu0 0.0
        %281 = vmatpush2.msra.mxu0 0.0
        %282 = vmatprep.subr.mxu0 0.0
        %283 = vmatpush2.msra.mxu0 0.0
        %284 = vmatprep.subr.mxu0 0.0
        %285 = vmatpush2.msra.mxu0 0.0
        %286 = vmatprep.subr.mxu0 0.0
        %287 = vmatpush2.msra.mxu0 0.0
        %288 = vmatprep.subr.mxu0 0.0
        %289 = vmatpush2.msra.mxu0 0.0
        %290 = vmatprep.subr.mxu0 0.0
        %291 = vmatpush2.msra.mxu0 0.0
        %292 = vmatprep.subr.mxu0 0.0
        %293 = vmatpush2.msra.mxu0 0.0
        %294 = vmatprep.subr.mxu0 0.0
        %295 = vmatpush2.msra.mxu0 0.0
        %296 = vmatprep.subr.mxu0 0.0
        %297 = vmatpush2.msra.mxu0 0.0
        %298 = vmatprep.subr.mxu0 0.0
        %299 = vmatpush2.msra.mxu0 0.0
        %300 = vmatprep.subr.mxu0 0.0
        %301 = vmatpush2.msra.mxu0 0.0
        %302 = vmatprep.subr.mxu0 0.0
        %303 = vmatpush2.msra.mxu0 0.0
        %304 = vmatprep.subr.mxu0 0.0
        %305 = vmatpush2.msra.mxu0 0.0
        %306 = vmatprep.subr.mxu0 0.0
        %307 = vmatpush2.msra.mxu0 0.0
        %308 = vmatprep.subr.mxu0 0.0
        %309 = vmatpush2.msra.mxu0 0.0
        %310 = vmatprep.subr.mxu0 0.0
        %311 = vmatpush2.msra.mxu0 0.0
        %312 = vmatprep.mubr.f32.mxu0 0.0
        %313 = vmatmul.mubr.f32.gmra.mxu0 %v243
        %v314 = vpop.f32.mrf.mxu0
        %v315 = vadd.f32 0.0, %v314
        %v316 = vpop.f32.mrf.mxu0
        %317 = vmatprep.mubr.f32.mxu0 0.0
        %318 = vmatmul.mubr.f32.gmra.mxu0 %v246
        %v319 = vpop.f32.mrf.mxu0
        %v320 = vadd.f32 0.0, %v319
        %v321 = vpop.f32.mrf.mxu0
        %322 = vdwg.mxu0
        %v323 = vld [vmem:[%s227] sm:$0xff]
        %v324 = vld [vmem:[%s227 + $0x8] sm:$0xff]
        %326 = vset.pattern.permute.xlu0 0
        %327 = vperm.xlu0 %326, %v323
        %v328 = vpop.permute.xlu0 %327
        %331 = vset.pattern.permute.xlu0 0
        %332 = vperm.xlu0 %331, %v324
        %v333 = vpop.permute.xlu0 %332
        %v335 = vmul.f32 %v328, %v315
        %v336 = vmul.f32 %v333, %v320
        %337 = vset.pattern.permute.xlu0 1
        %338 = vperm.xlu0 %337, %v323
        %v339 = vpop.permute.xlu0 %338
        %341 = vset.pattern.permute.xlu0 1
        %342 = vperm.xlu0 %341, %v324
        %v343 = vpop.permute.xlu0 %342
        %v345 = vmul.f32 %v339, %v315
        %v346 = vmul.f32 %v343, %v320
        %349 = vrot.lane.b32.xlu0 %v345, 96
        %v350 = vpop.permute.xlu0 %349
        %351 = vrot.lane.b32.xlu0 %v346, 96
        %v352 = vpop.permute.xlu0 %351
        %v355 = vadd.f32 %v335, %v350
        %v356 = vadd.f32 %v336, %v352
        %357 = vset.pattern.permute.xlu0 2
        %358 = vperm.xlu0 %357, %v323
        %v359 = vpop.permute.xlu0 %358
        %361 = vset.pattern.permute.xlu0 2
        %362 = vperm.xlu0 %361, %v324
        %v363 = vpop.permute.xlu0 %362
        %v365 = vmul.f32 %v359, %v315
        %v366 = vmul.f32 %v363, %v320
        %369 = vrot.lane.b32.xlu0 %v365, 64
        %v370 = vpop.permute.xlu0 %369
        %371 = vrot.lane.b32.xlu0 %v366, 64
        %v372 = vpop.permute.xlu0 %371
        %v375 = vadd.f32 %v355, %v370
        %v376 = vadd.f32 %v356, %v372
        %377 = vset.pattern.permute.xlu0 3
        %378 = vperm.xlu0 %377, %v323
        %v379 = vpop.permute.xlu0 %378
        %381 = vset.pattern.permute.xlu0 3
        %382 = vperm.xlu0 %381, %v324
        %v383 = vpop.permute.xlu0 %382
        %v385 = vmul.f32 %v379, %v315
        %v386 = vmul.f32 %v383, %v320
        %389 = vrot.lane.b32.xlu0 %v385, 32
        %v390 = vpop.permute.xlu0 %389
        %391 = vrot.lane.b32.xlu0 %v386, 32
        %v392 = vpop.permute.xlu0 %391
        %v395 = vadd.f32 %v375, %v390
        %v396 = vadd.f32 %v376, %v392
        %vm397 = vcmask 261120
        %398 = vst.msk [vmem:[%s204] sm:$0xff] %vm397, %v395
        %399 = vst.msk [vmem:[%s204 + $0x8] sm:$0xff] %vm397, %v396
        %s400 = sand.u32 %s98, 1
        %s401 = scalar_lea.sflag [#allocation3], %s400
        %s402 = sand.u32 %s98, 1
        %s403 = smul.addr %s402, 16
        %s404 = scalar_lea.vmem [#allocation2], %s403
        // Predicated region
        $region33: #{tensor_product_weights_block.1} parent=31 // pred_check
          %p405 = pneg %p108
        $region34: #{tensor_product_weights_block.1} parent=31 // pred_check_branch
          %407 = sbr.rel (%p405) target = $region36
        $region35: #{tensor_product_weights_block.1} parent=31 // pred_region
          %s408 = smul.u32 2, %s17
          %s409 = ssub.s32 3, %s408
          %p410 = scmp.lt.s32.totalorder %s409, 2
          %s411 = scalar_select %p410, %s409, 2
          %s412 = smul.u32 128, %s411
          %s414 = ssub.s32 256, %s412
          %415 = vsyncadd %s401, %s414
          %p416 = scmp.ne.s32.totalorder 0, %s412
          %s417 = smul.addr %s408, 128
          %s418 = scalar_lea.hbm %s3, %s417
          %s419 = smul.u32 8, %s411
          %s420 = sshll.u32 %s404, 4
          %s421 = int_to_ptr.vmem [resolvable:$true] %s420
          %s422 = sshll.u32 %s419, 4
          %426 = dma.vmem_to_hbm [thread:$0]  (%p416), %s421, %s422, %s418, %s401, 128, 128, 8
        $region36: #{tensor_product_weights_block.1} parent=31 // pred_fallthru
          _
      $region32: #{tensor_product_weights_block.1} parent=5 // pred_fallthru
        _
      %p427 = scmp.le.s32.totalorder 2, %s12
      // Predicated region
      $region37: #{tensor_product_weights_block.1} parent=5 // pred_check
        %p428 = pneg %p427
      $region38: #{tensor_product_weights_block.1} parent=5 // pred_check_branch
        %430 = sbr.rel (%p428) target = $region40
      $region39: #{tensor_product_weights_block.1} parent=5 // pred_region
        %s431 = ssub.s32 %s12, 2
        // Predicated region
        $region41: #{tensor_product_weights_block.1} parent=39 // pred_check
          %p432 = pneg %p114
        $region42: #{tensor_product_weights_block.1} parent=39 // pred_check_branch
          %434 = sbr.rel (%p432) target = $region44
        $region43: #{tensor_product_weights_block.1} parent=39 // pred_region
          %s435 = sand.u32 %s99, 1
          %s436 = scalar_lea.sflag [#allocation3], %s435
          %s437 = sand.u32 %s99, 1
          %s438 = smul.addr %s437, 16
          %s439 = scalar_lea.vmem [#allocation2], %s438
          %440 = dma.done %s436, 256
        $region44: #{tensor_product_weights_block.1} parent=39 // pred_fallthru
          _
      $region40: #{tensor_product_weights_block.1} parent=5 // pred_fallthru
        _
    $region6: #{tensor_product_weights_block.1} parent=1 // loop_footer
      %s16 = sadd.s32 1, %s12
    $region7: #{tensor_product_weights_block.1} parent=1 // loop_footer_branch
      %11 = sbr.rel target = $region3
    $region8: #{tensor_product_weights_block.1} parent=1 // loop_exit
      _
    %441 = vsyncpa [#allocation3], 1
    %s442 = scalar_lea.sflag [#allocation3], 1
    %443 = vsyncpa %s442, 1

</llo_original>
